<compile_context>
chip_gen: v7x
topology: tpu7x:2x2x1
jax: 0.10.0
libtpu: 0.0.40
codegen_flags: <defaults>
</compile_context>

<pallas_src>
import functools

import jax
import jax.numpy as jnp
from jax import lax
from jax.experimental import pallas as pl
from jax.experimental.pallas import tpu as pltpu


def _round_up(x, m):
    return ((x + m - 1) // m) * m


def _srl(x, n):
    """Logical right shift of an int32 array by a static amount."""
    return lax.shift_right_logical(x, jnp.full(x.shape, n, x.dtype))


def _hash32(x):
    """lowbias32 integer mixer (wrapping int32 arithmetic, logical shifts)."""
    x = x ^ _srl(x, 16)
    x = x * jnp.int32(0x7FEB352D)
    x = x ^ _srl(x, 15)
    x = x * jnp.int32(0x846CA68B - (1 << 32))   # 0x846CA68B as int32
    x = x ^ _srl(x, 16)
    return x


def _layer_kernel(drop_prob, training, h_real,
                  seed_ref,                           # scalar-prefetch (SMEM)
                  y_ref, w_ref, b_ref, g_ref, be_ref,  # VMEM tiles
                  o_ref):                             # output tile
    y = y_ref[...]                                    # (tm, Hp) f32
    tm, hp = y.shape

    # Linear: rows @ W^T + b.  bf16 operands feed the MXU, accumulate in f32.
    x = jnp.dot(y.astype(jnp.bfloat16), w_ref[...],
                preferred_element_type=jnp.float32)
    x = x + b_ref[...]

    col = lax.broadcasted_iota(jnp.int32, (tm, hp), 1)

    # LayerNorm over the real hidden dim (PyTorch: biased variance, eps=1e-5).
    inv_h = jnp.float32(1.0 / h_real)
    mean = jnp.sum(x, axis=-1, keepdims=True) * inv_h
    cen = x - mean
    if hp != h_real:                                  # zero the padded lanes
        cen = jnp.where(col < h_real, cen, 0.0)
    var = jnp.sum(cen * cen, axis=-1, keepdims=True) * inv_h
    xn = cen * lax.rsqrt(var + jnp.float32(1e-5))
    xn = xn * g_ref[...] + be_ref[...]

    # ReLU
    xr = jnp.maximum(xn, 0.0)

    # Dropout (inverted, scale by 1/(1-p)).  Counter-based hash keyed on
    # (seed, global element index): reproducible across tile-size changes.
    if training and 0.0 < drop_prob < 1.0:
        row = lax.broadcasted_iota(jnp.int32, (tm, hp), 0)
        grow = pl.program_id(0) * tm + row            # global row index
        ctr = grow * hp + col
        bits = _hash32(ctr + seed_ref[0] * jnp.int32(0x9E3779B9 - (1 << 32)))
        bits31 = _srl(bits, 1)                        # uniform in [0, 2^31)
        thresh = min(int(round(drop_prob * float(1 << 31))), (1 << 31) - 1)
        keep = bits31 >= jnp.int32(thresh)
        scale = jnp.float32(1.0 / (1.0 - drop_prob))
        xr = jnp.where(keep, xr * scale, jnp.float32(0.0))

    # Residual add
    o_ref[...] = (xr + y).astype(o_ref.dtype)


def layer_forward(y, w, b, gamma, beta, seed, *, drop_prob=0.2, training=True, tm=256):
    """y: [B, S, H] f32.  w: [H, H] PyTorch Linear weight (out, in).  Returns [B, S, H]."""
    B, S, H = y.shape
    N = B * S
    Hp = _round_up(H, 128)                            # lane-dense hidden dim
    tm_eff = max(8, min(tm, _round_up(N, 8)))
    Np = _round_up(N, tm_eff)

    y2 = y.reshape(N, H).astype(jnp.float32)
    if (Np, Hp) != (N, H):
        y2 = jnp.pad(y2, ((0, Np - N), (0, Hp - H)))

    w_t = jnp.pad(w.T.astype(jnp.bfloat16), ((0, Hp - H), (0, Hp - H)))  # rows @ W^T
    b2 = jnp.pad(b.astype(jnp.float32), (0, Hp - H)).reshape(1, Hp)
    g2 = jnp.pad(gamma.astype(jnp.float32), (0, Hp - H)).reshape(1, Hp)
    be2 = jnp.pad(beta.astype(jnp.float32), (0, Hp - H)).reshape(1, Hp)
    seed_arr = jnp.asarray([seed], dtype=jnp.int32)

    kernel = functools.partial(_layer_kernel, float(drop_prob), bool(training), H)

    # Rough VMEM budget (double-buffered blocks) with 2x headroom, capped for v7x.
    vmem_bytes = (2 * 2 * tm_eff * Hp * 4             # y in + out, f32, double-buffered
                  + 2 * Hp * Hp * 2                   # W^T bf16, double-buffered
                  + 2 * 3 * 8 * Hp * 4)               # bias / gamma / beta tiles
    vmem_limit = int(min(max(2 * vmem_bytes, 32 * 1024 * 1024), 64 * 1024 * 1024))

    out = pl.pallas_call(
        kernel,
        out_shape=jax.ShapeDtypeStruct((Np, Hp), jnp.float32),
        grid_spec=pltpu.PrefetchScalarGridSpec(
            num_scalar_prefetch=1,
            grid=(Np // tm_eff,),
            in_specs=[
                pl.BlockSpec((tm_eff, Hp), lambda i, seed: (i, 0)),   # y rows
                pl.BlockSpec((Hp, Hp), lambda i, seed: (0, 0)),       # W^T (resident)
                pl.BlockSpec((1, Hp), lambda i, seed: (0, 0)),        # bias
                pl.BlockSpec((1, Hp), lambda i, seed: (0, 0)),        # LN gamma
                pl.BlockSpec((1, Hp), lambda i, seed: (0, 0)),        # LN beta
            ],
            out_specs=pl.BlockSpec((tm_eff, Hp), lambda i, seed: (i, 0)),
        ),
        compiler_params=pltpu.CompilerParams(
            dimension_semantics=("parallel",),        # grid steps are independent
            vmem_limit_bytes=vmem_limit,
        ),
    )(seed_arr, y2, w_t, b2, g2, be2)

    # TODO(synk): for very large H (e.g. >= 4k on v7x, 64 MiB VMEM) the resident W^T
    # block should get a second (reduction) grid axis + f32 accumulator instead of a
    # single (Hp, Hp) block.
    return out[:N, :H].reshape(B, S, H)


def _reference(y, w, b, gamma, beta):
    x = jnp.einsum("bsh,oh->bso", y, w) + b           # Linear: y @ W^T + b
    mean = jnp.mean(x, axis=-1, keepdims=True)
    var = jnp.mean((x - mean) ** 2, axis=-1, keepdims=True)
    xn = (x - mean) * lax.rsqrt(var + 1e-5) * gamma + beta
    return jnp.maximum(xn, 0.0) + y                   # eval mode (dropout = identity)


if __name__ == "__main__":
    B, S, H = 2, 8, 32
    key = jax.random.PRNGKey(0)
    k_y, k_w, k_b = jax.random.split(key, 3)

    y = jax.random.normal(k_y, (B, S, H), dtype=jnp.float32)

    # Deterministic parameter init (mimics nn.Linear uniform(-1/sqrt(H), 1/sqrt(H)))
    bound = 1.0 / (H ** 0.5)
    w = jax.random.uniform(k_w, (H, H), minval=-bound, maxval=bound, dtype=jnp.float32)
    b = jax.random.uniform(k_b, (H,), minval=-bound, maxval=bound, dtype=jnp.float32)
    gamma = jnp.ones((H,), dtype=jnp.float32)         # LayerNorm weight
    beta = jnp.zeros((H,), dtype=jnp.float32)         # LayerNorm bias

    # Eval mode: check against a pure-JAX reference (bf16 matmul => loose tolerance).
    out_eval = layer_forward(y, w, b, gamma, beta, seed=0, drop_prob=0.2, training=False)
    jax.block_until_ready(out_eval)
    ref = _reference(y, w, b, gamma, beta)
    max_err = float(jnp.max(jnp.abs(out_eval - ref)))
    assert out_eval.shape == (B, S, H)
    assert max_err < 5e-2, f"mismatch vs reference: {max_err}"

    # Training mode: exercise the in-kernel dropout path.
    out_train = layer_forward(y, w, b, gamma, beta, seed=123, drop_prob=0.2, training=True)
    jax.block_until_ready(out_train)
    assert out_train.shape == (B, S, H)
    assert bool(jnp.all(jnp.isfinite(out_train)))

    print("KERNEL_OK")
</pallas_src>

<mosaic_0001>
module attributes {stable_mosaic.version = 11 : i64} {
  func.func @_layer_kernel(%arg0: i32, %arg1: memref<1xi32, #tpu.memory_space<smem>>, %arg2: memref<16x128xf32, #tpu.memory_space<vmem>>, %arg3: memref<128x128xbf16, #tpu.memory_space<vmem>>, %arg4: memref<1x128xf32, #tpu.memory_space<vmem>>, %arg5: memref<1x128xf32, #tpu.memory_space<vmem>>, %arg6: memref<1x128xf32, #tpu.memory_space<vmem>>, %arg7: memref<16x128xf32, #tpu.memory_space<vmem>>) attributes {dimension_semantics = [#tpu.dimension_semantics<parallel>], iteration_bounds = array<i64: 1>, scalar_prefetch = 1 : i64, scratch_operands = 0 : i64, tpu.core_type = #tpu.core_type<tc>, window_params = [{transform_indices = @transform_0, window_bounds = array<i64: 16, 128>}, {pipeline_mode = #tpu.pipeline_mode<synchronous>, transform_indices = @transform_1, window_bounds = array<i64: 128, 128>}, {pipeline_mode = #tpu.pipeline_mode<synchronous>, transform_indices = @transform_2, window_bounds = array<i64: 1, 128>}, {pipeline_mode = #tpu.pipeline_mode<synchronous>, transform_indices = @transform_3, window_bounds = array<i64: 1, 128>}, {pipeline_mode = #tpu.pipeline_mode<synchronous>, transform_indices = @transform_4, window_bounds = array<i64: 1, 128>}, {transform_indices = @transform_5, window_bounds = array<i64: 16, 128>}]} {
    %c0 = arith.constant 0 : index
    %c0_0 = arith.constant 0 : index
    %0 = vector.load %arg2[%c0, %c0_0] : memref<16x128xf32, #tpu.memory_space<vmem>>, vector<16x128xf32>
    %1 = arith.truncf %0 : vector<16x128xf32> to vector<16x128xbf16>
    %c0_1 = arith.constant 0 : index
    %c0_2 = arith.constant 0 : index
    %2 = vector.load %arg3[%c0_1, %c0_2] : memref<128x128xbf16, #tpu.memory_space<vmem>>, vector<128x128xbf16>
    %cst = arith.constant dense<0.000000e+00> : vector<16x128xf32>
    %3 = tpu.matmul %1, %2, %cst {dimension_numbers = #tpu.dot_dimension_numbers<[1], [0], [0], [1], [0, 0, 1, 1], [], []>} : vector<16x128xbf16>, vector<128x128xbf16>, vector<16x128xf32> -> vector<16x128xf32>
    %c0_3 = arith.constant 0 : index
    %c0_4 = arith.constant 0 : index
    %4 = vector.load %arg4[%c0_3, %c0_4] : memref<1x128xf32, #tpu.memory_space<vmem>>, vector<1x128xf32>
    %5 = vector.broadcast %4 : vector<1x128xf32> to vector<16x128xf32>
    %6 = arith.addf %3, %5 : vector<16x128xf32>
    %7 = tpu.iota {dimensions = array<i32: 1>} : vector<16x128xi32>
    %cst_5 = arith.constant dense<0.000000e+00> : vector<16xf32>
    %8 = vector.multi_reduction <add>, %6, %cst_5 [1] : vector<16x128xf32> to vector<16xf32>
    %9 = vector.shape_cast %8 : vector<16xf32> to vector<16x1xf32>
    %cst_6 = arith.constant 3.125000e-02 : f32
    %10 = vector.broadcast %cst_6 : f32 to vector<16x1xf32>
    %11 = arith.mulf %9, %10 : vector<16x1xf32>
    %12 = vector.broadcast %11 : vector<16x1xf32> to vector<16x128xf32>
    %13 = arith.subf %6, %12 : vector<16x128xf32>
    %c32_i32 = arith.constant 32 : i32
    %14 = vector.broadcast %c32_i32 : i32 to vector<16x128xi32>
    %15 = arith.cmpi slt, %7, %14 : vector<16x128xi32>
    %cst_7 = arith.constant 0.000000e+00 : f32
    %16 = vector.broadcast %cst_7 : f32 to vector<16x128xf32>
    %17 = arith.select %15, %13, %16 : vector<16x128xi1>, vector<16x128xf32>
    %18 = arith.mulf %17, %17 : vector<16x128xf32>
    %cst_8 = arith.constant dense<0.000000e+00> : vector<16xf32>
    %19 = vector.multi_reduction <add>, %18, %cst_8 [1] : vector<16x128xf32> to vector<16xf32>
    %20 = vector.shape_cast %19 : vector<16xf32> to vector<16x1xf32>
    %cst_9 = arith.constant 3.125000e-02 : f32
    %21 = vector.broadcast %cst_9 : f32 to vector<16x1xf32>
    %22 = arith.mulf %20, %21 : vector<16x1xf32>
    %cst_10 = arith.constant 9.99999974E-6 : f32
    %23 = vector.broadcast %cst_10 : f32 to vector<16x1xf32>
    %24 = arith.addf %22, %23 : vector<16x1xf32>
    %25 = math.rsqrt %24 : vector<16x1xf32>
    %26 = vector.broadcast %25 : vector<16x1xf32> to vector<16x128xf32>
    %27 = arith.mulf %17, %26 : vector<16x128xf32>
    %c0_11 = arith.constant 0 : index
    %c0_12 = arith.constant 0 : index
    %28 = vector.load %arg5[%c0_11, %c0_12] : memref<1x128xf32, #tpu.memory_space<vmem>>, vector<1x128xf32>
    %29 = vector.broadcast %28 : vector<1x128xf32> to vector<16x128xf32>
    %30 = arith.mulf %27, %29 : vector<16x128xf32>
    %c0_13 = arith.constant 0 : index
    %c0_14 = arith.constant 0 : index
    %31 = vector.load %arg6[%c0_13, %c0_14] : memref<1x128xf32, #tpu.memory_space<vmem>>, vector<1x128xf32>
    %32 = vector.broadcast %31 : vector<1x128xf32> to vector<16x128xf32>
    %33 = arith.addf %30, %32 : vector<16x128xf32>
    %cst_15 = arith.constant 0.000000e+00 : f32
    %34 = vector.broadcast %cst_15 : f32 to vector<16x128xf32>
    %35 = arith.maximumf %33, %34 : vector<16x128xf32>
    %36 = arith.addf %35, %0 : vector<16x128xf32>
    %c0_16 = arith.constant 0 : index
    %c0_17 = arith.constant 0 : index
    %37 = vector.load %arg7[%c0_16, %c0_17] : memref<16x128xf32, #tpu.memory_space<vmem>>, vector<16x128xf32>
    tpu.vector_store %arg7[%c0_16, %c0_17], %36 {strides = array<i32>} : memref<16x128xf32, #tpu.memory_space<vmem>>, vector<16x128xf32>,
    return
  }
  func.func @transform_0(%arg0: i32, %arg1: memref<1xi32, #tpu.memory_space<smem>>) -> (i32, i32) {
    %c0_i32 = arith.constant 0 : i32
    %c0_i32_0 = arith.constant 0 : i32
    return %arg0, %c0_i32 : i32, i32
  }
  func.func @transform_1(%arg0: i32, %arg1: memref<1xi32, #tpu.memory_space<smem>>) -> (i32, i32) {
    %c0_i32 = arith.constant 0 : i32
    %c0_i32_0 = arith.constant 0 : i32
    %c0_i32_1 = arith.constant 0 : i32
    return %c0_i32, %c0_i32_0 : i32, i32
  }
  func.func @transform_2(%arg0: i32, %arg1: memref<1xi32, #tpu.memory_space<smem>>) -> (i32, i32) {
    %c0_i32 = arith.constant 0 : i32
    %c0_i32_0 = arith.constant 0 : i32
    %c0_i32_1 = arith.constant 0 : i32
    return %c0_i32, %c0_i32_0 : i32, i32
  }
  func.func @transform_3(%arg0: i32, %arg1: memref<1xi32, #tpu.memory_space<smem>>) -> (i32, i32) {
    %c0_i32 = arith.constant 0 : i32
    %c0_i32_0 = arith.constant 0 : i32
    %c0_i32_1 = arith.constant 0 : i32
    return %c0_i32, %c0_i32_0 : i32, i32
  }
  func.func @transform_4(%arg0: i32, %arg1: memref<1xi32, #tpu.memory_space<smem>>) -> (i32, i32) {
    %c0_i32 = arith.constant 0 : i32
    %c0_i32_0 = arith.constant 0 : i32
    %c0_i32_1 = arith.constant 0 : i32
    return %c0_i32, %c0_i32_0 : i32, i32
  }
  func.func @transform_5(%arg0: i32, %arg1: memref<1xi32, #tpu.memory_space<smem>>) -> (i32, i32) {
    %c0_i32 = arith.constant 0 : i32
    %c0_i32_0 = arith.constant 0 : i32
    return %arg0, %c0_i32 : i32, i32
  }
}

</mosaic_0001>

<llo_original>
// kernel: tpu_custom_call.1
$region0: #{tpu_custom_call.1}
  #allocation0 [shape = 'u32[]', space=smem, size = 0x4, offset = 0x4, fixed_abs, tag = 'smem constant byte address 0x4 - core index']
  #allocation1 [shape = 'u32[144,128]{1,0:T(1,128)}', space=vmem, size = 0x12000, scoped, tag = 'internal scratch']
  #allocation2 [shape = 's32[1]{0}', space=sflag, size = 0x4, scoped, tag = 'scoped memory for tpu_custom_call.1']
  #allocation3 [shape = 's32[1]{0:T(128)S(6)}', space=smem, size = 0x200, scoped, tag = 'prefetched SMEM operand 0']
  %s0 = inlined_call_operand.<no memory space> [shape: s32[1], index: 0, kind: input, shape index: {}]
  %s1 = inlined_call_operand.hbm [shape: f32[16,128], index: 1, kind: input, shape index: {}]
  %s2 = inlined_call_operand.hbm [shape: bf16[128,128], index: 2, kind: input, shape index: {}]
  %s3 = inlined_call_operand.vmem [shape: f32[1,128], index: 3, kind: input, shape index: {}]
  %s4 = inlined_call_operand.vmem [shape: f32[1,128], index: 4, kind: input, shape index: {}]
  %s5 = inlined_call_operand.vmem [shape: f32[1,128], index: 5, kind: input, shape index: {}]
  %s6 = inlined_call_operand.hbm [shape: f32[16,128], index: 6, kind: output, shape index: {}]
  %s7 = sld [smem:[#allocation0]]
  $region38: #{tpu_custom_call.1} parent=0
    _
  %s9 = ssub.s32 1, %s7
  %s10 = scalar_select 0, %s9, %s7
  %11 = sst [smem:[#allocation3]] %s0
  $region1: #{tpu_custom_call.1} parent=0
    #allocation4 [shape = 'u8[8192]{0}', space=vmem, size = 0x2000, scoped, tag = 'input window, operand 1, single buffered']
    #allocation5 [shape = 's32[1]{0}', space=sflag, size = 0x4, scoped, tag = 'scoped memory for tpu_custom_call.1']
    #allocation6 [shape = 's32[1]{0}', space=sflag, size = 0x4, scoped, tag = 'scoped memory for tpu_custom_call.1']
    #allocation7 [shape = 'u8[32768]{0}', space=vmem, size = 0x8000, scoped, tag = 'input window, operand 2, single buffered']
    #allocation8 [shape = 's32[1]{0}', space=sflag, size = 0x4, scoped, tag = 'scoped memory for tpu_custom_call.1']
    #allocation9 [shape = 'u8[8192]{0}', space=vmem, size = 0x2000, scoped, tag = 'output window, operand 0, single buffered']
    %12 = vsyncpa [#allocation5], 0
    %13 = vsyncpa [#allocation8], 0
    %14 = vsyncpa [#allocation6], 0
    // Predicated region
    $region2: #{tpu_custom_call.1} parent=1 // pred_check
      _
    $region3: #{tpu_custom_call.1} parent=1 // pred_check_branch
      %16 = sbr.rel (0) target = $region5
    $region4: #{tpu_custom_call.1} parent=1 // pred_region
      %s18 = ssub.s32 256, 256
      %19 = vsyncadd [#allocation5], %s18
      %s20 = sshll.u32 [#allocation4], 4
      %s21 = int_to_ptr.vmem [resolvable:$true] %s20
      %26 = dma.hbm_to_vmem [thread:$0]  %s1, 256, %s21, [#allocation5], 128, 128, 8
    $region5: #{tpu_custom_call.1} parent=1 // pred_fallthru
      _
    // Predicated region
    $region6: #{tpu_custom_call.1} parent=1 // pred_check
      _
    $region7: #{tpu_custom_call.1} parent=1 // pred_check_branch
      %28 = sbr.rel (0) target = $region9
    $region8: #{tpu_custom_call.1} parent=1 // pred_region
      %s30 = ssub.s32 1024, 1024
      %31 = vsyncadd [#allocation8], %s30
      %s32 = sshll.u32 [#allocation7], 4
      %s33 = int_to_ptr.vmem [resolvable:$true] %s32
      %38 = dma.hbm_to_vmem [thread:$0]  %s2, 1024, %s33, [#allocation8], 64, 64, 4
    $region9: #{tpu_custom_call.1} parent=1 // pred_fallthru
      _
    // Predicated region
    $region10: #{tpu_custom_call.1} parent=1 // pred_check
      _
    $region11: #{tpu_custom_call.1} parent=1 // pred_check_branch
      %40 = sbr.rel (0) target = $region13
    $region12: #{tpu_custom_call.1} parent=1 // pred_region
      _
    $region13: #{tpu_custom_call.1} parent=1 // pred_fallthru
      _
    // Predicated region
    $region14: #{tpu_custom_call.1} parent=1 // pred_check
      _
    $region15: #{tpu_custom_call.1} parent=1 // pred_check_branch
      %42 = sbr.rel (0) target = $region17
    $region16: #{tpu_custom_call.1} parent=1 // pred_region
      _
    $region17: #{tpu_custom_call.1} parent=1 // pred_fallthru
      _
    // Predicated region
    $region18: #{tpu_custom_call.1} parent=1 // pred_check
      _
    $region19: #{tpu_custom_call.1} parent=1 // pred_check_branch
      %44 = sbr.rel (0) target = $region21
    $region20: #{tpu_custom_call.1} parent=1 // pred_region
      _
    $region21: #{tpu_custom_call.1} parent=1 // pred_fallthru
      _
    // Predicated region
    $region22: #{tpu_custom_call.1} parent=1 // pred_check
      _
    $region23: #{tpu_custom_call.1} parent=1 // pred_check_branch
      %46 = sbr.rel (0) target = $region25
    $region24: #{tpu_custom_call.1} parent=1 // pred_region
      %47 = dma.done [#allocation5], 256
    $region25: #{tpu_custom_call.1} parent=1 // pred_fallthru
      _
    // Predicated region
    $region26: #{tpu_custom_call.1} parent=1 // pred_check
      _
    $region27: #{tpu_custom_call.1} parent=1 // pred_check_branch
      %49 = sbr.rel (0) target = $region29
    $region28: #{tpu_custom_call.1} parent=1 // pred_region
      %50 = dma.done [#allocation8], 1024
    $region29: #{tpu_custom_call.1} parent=1 // pred_fallthru
      _
    %v52 = vld [vmem:[#allocation4] sm:$0xff]
    %v53 = vld [vmem:[#allocation4 + $0x8] sm:$0xff]
    %v54 = vpack.c.bf16 %v53, %v52
    %v55 = vld [vmem:[#allocation7] sm:$0xf]
    %v56 = vld [vmem:[#allocation7 + $0x4] sm:$0xf]
    %v57 = vld [vmem:[#allocation7 + $0x8] sm:$0xf]
    %v58 = vld [vmem:[#allocation7 + $0xc] sm:$0xf]
    %v59 = vld [vmem:[#allocation7 + $0x10] sm:$0xf]
    %v60 = vld [vmem:[#allocation7 + $0x14] sm:$0xf]
    %v61 = vld [vmem:[#allocation7 + $0x18] sm:$0xf]
    %v62 = vld [vmem:[#allocation7 + $0x1c] sm:$0xf]
    %v63 = vld [vmem:[#allocation7 + $0x20] sm:$0xf]
    %v64 = vld [vmem:[#allocation7 + $0x24] sm:$0xf]
    %v65 = vld [vmem:[#allocation7 + $0x28] sm:$0xf]
    %v66 = vld [vmem:[#allocation7 + $0x2c] sm:$0xf]
    %v67 = vld [vmem:[#allocation7 + $0x30] sm:$0xf]
    %v68 = vld [vmem:[#allocation7 + $0x34] sm:$0xf]
    %v69 = vld [vmem:[#allocation7 + $0x38] sm:$0xf]
    %v70 = vld [vmem:[#allocation7 + $0x3c] sm:$0xf]
    %v71 = vld [vmem:[%s3] sm:$0x1]
    %v73 = vlaneseq
    %v74 = vshrl.u32 %v73, 7
    %v75 = vsub.s32 0, %v74
    %v76 = vrot.slane %v71, %v75
    %v94 = vunpack.c.l.b16 %v55
    %v95 = vunpack.c.l.b16 %v56
    %v96 = vunpack.c.l.b16 %v57
    %v97 = vunpack.c.l.b16 %v58
    %v98 = vunpack.c.l.b16 %v59
    %v99 = vunpack.c.l.b16 %v60
    %v100 = vunpack.c.l.b16 %v61
    %v101 = vunpack.c.l.b16 %v62
    %v102 = vunpack.c.l.b16 %v63
    %v103 = vunpack.c.l.b16 %v64
    %v104 = vunpack.c.l.b16 %v65
    %v105 = vunpack.c.l.b16 %v66
    %v106 = vunpack.c.l.b16 %v67
    %v107 = vunpack.c.l.b16 %v68
    %v108 = vunpack.c.l.b16 %v69
    %v109 = vunpack.c.l.b16 %v70
    %v110 = vpack.c.b16 %v95, %v94
    %v111 = vpack.c.b16 %v97, %v96
    %v112 = vpack.c.b16 %v99, %v98
    %v113 = vpack.c.b16 %v101, %v100
    %v114 = vpack.c.b16 %v103, %v102
    %v115 = vpack.c.b16 %v105, %v104
    %v116 = vpack.c.b16 %v107, %v106
    %v117 = vpack.c.b16 %v109, %v108
    %126 = vmatprep.subr.bf16.mxu0 0
    %127 = vmatpush1.bf16.msra.mxu0 %v110
    %128 = vmatprep.subr.bf16.mxu0 0
    %129 = vmatpush1.bf16.msra.mxu0 %v111
    %130 = vmatprep.subr.bf16.mxu0 0
    %131 = vmatpush1.bf16.msra.mxu0 %v112
    %132 = vmatprep.subr.bf16.mxu0 0
    %133 = vmatpush1.bf16.msra.mxu0 %v113
    %134 = vmatprep.subr.bf16.mxu0 0
    %135 = vmatpush1.bf16.msra.mxu0 %v114
    %136 = vmatprep.subr.bf16.mxu0 0
    %137 = vmatpush1.bf16.msra.mxu0 %v115
    %138 = vmatprep.subr.bf16.mxu0 0
    %139 = vmatpush1.bf16.msra.mxu0 %v116
    %140 = vmatprep.subr.bf16.mxu0 0
    %141 = vmatpush1.bf16.msra.mxu0 %v117
    %142 = vmatprep.subr.bf16.mxu0 0
    %143 = vmatpush1.bf16.msra.mxu0 0
    %144 = vmatprep.subr.bf16.mxu0 0
    %145 = vmatpush1.bf16.msra.mxu0 0
    %146 = vmatprep.subr.bf16.mxu0 0
    %147 = vmatpush1.bf16.msra.mxu0 0
    %148 = vmatprep.subr.bf16.mxu0 0
    %149 = vmatpush1.bf16.msra.mxu0 0
    %150 = vmatprep.subr.bf16.mxu0 0
    %151 = vmatpush1.bf16.msra.mxu0 0
    %152 = vmatprep.subr.bf16.mxu0 0
    %153 = vmatpush1.bf16.msra.mxu0 0
    %154 = vmatprep.subr.bf16.mxu0 0
    %155 = vmatpush1.bf16.msra.mxu0 0
    %156 = vmatprep.subr.bf16.mxu0 0
    %157 = vmatpush1.bf16.msra.mxu0 0
    %158 = vmatprep.mubr.bf16.mxu0 0
    %159 = vmatmul.mubr.bf16.gmra.mrb[0].mxu0 %v54
    %v160 = vpop.f32.mrb[0].mxu0
    %v161 = vadd.f32 %v76, %v160
    %v162 = vpop.f32.mrb[0].mxu0
    %v163 = vpop.f32.mrb[0].mxu0
    %v164 = vadd.f32 %v76, %v163
    %v165 = vpop.f32.mrb[0].mxu0
    %166 = vdwg.mxu0
    %v167 = vlaneseq
    %v168 = vand.u32 %v167, 127
    %169 = vadd.xlane.f32.xlu0 %v161
    %v170 = vpop.xlane.xlu0 %169
    %171 = vadd.xlane.f32.xlu0 %v164
    %v172 = vpop.xlane.xlu0 %171
    %v173 = vmul.f32 %v170, 0.03125
    %v174 = vmul.f32 %v172, 0.03125
    %v175 = vsub.f32 %v161, %v173
    %v176 = vsub.f32 %v164, %v174
    %vm177 = vcmp.lt.s32.totalorder %v168, 32
    %v178 = vsel %vm177, %v175, 0.0
    %v179 = vsel %vm177, %v176, 0.0
    %v180 = vmul.f32 %v178, %v178
    %v181 = vmul.f32 %v179, %v179
    %182 = vadd.xlane.f32.xlu0 %v180
    %v183 = vpop.xlane.xlu0 %182
    %184 = vadd.xlane.f32.xlu0 %v181
    %v185 = vpop.xlane.xlu0 %184
    %v186 = vmul.f32 %v183, 0.03125
    %v187 = vmul.f32 %v185, 0.03125
    %v188 = vadd.f32 %v186, 1e-05
    %v189 = vadd.f32 %v187, 1e-05
    %v190 = vrsqrt.pop %v188
    %v191 = vrsqrt.pop %v189
    %v192 = vmul.f32 %v178, %v190
    %v193 = vmul.f32 %v179, %v191
    %v194 = vld [vmem:[%s4] sm:$0x1]
    %v196 = vlaneseq
    %v197 = vshrl.u32 %v196, 7
    %v198 = vsub.s32 0, %v197
    %v199 = vrot.slane %v194, %v198
    %v201 = vmul.f32 %v192, %v199
    %v202 = vmul.f32 %v193, %v199
    %v203 = vld [vmem:[%s5] sm:$0x1]
    %v205 = vlaneseq
    %v206 = vshrl.u32 %v205, 7
    %v207 = vsub.s32 0, %v206
    %v208 = vrot.slane %v203, %v207
    %v210 = vadd.f32 %v201, %v208
    %v211 = vadd.f32 %v202, %v208
    %v212 = vmax.f32 %v210, 0.0
    %v213 = vmax.f32 %v211, 0.0
    %v214 = vadd.f32 %v212, %v52
    %v215 = vadd.f32 %v213, %v53
    %216 = vst [vmem:[#allocation9] sm:$0xff] %v214
    %217 = vst [vmem:[#allocation9 + $0x8] sm:$0xff] %v215
    // Predicated region
    $region30: #{tpu_custom_call.1} parent=1 // pred_check
      _
    $region31: #{tpu_custom_call.1} parent=1 // pred_check_branch
      %219 = sbr.rel (0) target = $region33
    $region32: #{tpu_custom_call.1} parent=1 // pred_region
      %s221 = ssub.s32 256, 256
      %222 = vsyncadd [#allocation6], %s221
      %s223 = sshll.u32 [#allocation9], 4
      %s224 = int_to_ptr.vmem [resolvable:$true] %s223
      %229 = dma.vmem_to_hbm [thread:$0]  %s224, 256, %s6, [#allocation6], 128, 128, 8
    $region33: #{tpu_custom_call.1} parent=1 // pred_fallthru
      _
    // Predicated region
    $region34: #{tpu_custom_call.1} parent=1 // pred_check
      _
    $region35: #{tpu_custom_call.1} parent=1 // pred_check_branch
      %231 = sbr.rel (0) target = $region37
    $region36: #{tpu_custom_call.1} parent=1 // pred_region
      %232 = dma.done [#allocation6], 256
    $region37: #{tpu_custom_call.1} parent=1 // pred_fallthru
      _
    %233 = vsyncpa [#allocation5], 1
    %234 = vsyncpa [#allocation8], 1
    %235 = vsyncpa [#allocation6], 1

</llo_original>
